<compile_context>
chip_gen: v7x
topology: tpu7x:2x2x1
jax: 0.10.0
libtpu: 0.0.40
codegen_flags: <defaults>
</compile_context>

<pallas_src>
import numpy as np
import jax
import jax.numpy as jnp
from jax.experimental import pallas as pl
from jax.experimental.pallas import tpu as pltpu

_VMEM_BUDGET = 40 * 1024 * 1024   # per-core tile budget (fits v7x 64 MiB VMEM)
_VMEM_LIMIT = 48 * 1024 * 1024    # raise scoped limit (default 16/32 MiB)


def _round_up(x, m):
    return ((x + m - 1) // m) * m


def _largest_divisor_tile(total, max_tile, align):
    """Largest multiple of `align` that divides `total` and is <= max_tile;
    falls back to `total` itself (full extent is always legal)."""
    cand = (min(max_tile, total) // align) * align
    while cand >= align:
        if total % cand == 0:
            return cand
        cand -= align
    return total


def rakel_kernel(x_ref, w_ref, o_ref):
    """One (tb,tk)@(tk,tl) bf16 MXU step; f32 output tile is the accumulator."""
    @pl.when(pl.program_id(2) == 0)
    def _():
        o_ref[...] = jnp.zeros_like(o_ref)

    o_ref[...] += jnp.dot(x_ref[...], w_ref[...],
                          preferred_element_type=jnp.float32)


def fold_and_pad_weights(w_stack, b_stack, mask_stack):
    """One-time init: fold the ensemble into a single weight/bias, pad the
    weight to (128,128)-aligned shape and cast to bf16.  The per-call path
    never touches the (E+1)-deep stack again."""
    _, D, L = w_stack.shape
    Dp = _round_up(D, 128)
    Lp = _round_up(L, 128)
    w_fold = jnp.sum(w_stack * mask_stack, axis=0)            # [D, L] f32
    b_fold = jnp.sum(b_stack * mask_stack, axis=0)            # [1, L] f32
    wp = (jnp.zeros((Dp, Lp), jnp.bfloat16)
              .at[:D, :L].set(w_fold.astype(jnp.bfloat16)))
    return wp, b_fold


@jax.jit
def rakel_forward(x, wp, b_fold):
    """RAKEL forward: out = x @ W_fold + b_fold.
    x: [B, D] f32; wp: [Dp, Lp] bf16 (pre-folded, pre-padded); b_fold: [1, L] f32."""
    B, D = x.shape
    Dp, Lp = wp.shape
    L = b_fold.shape[-1]

    # ---------- static tile selection (shapes are static under jit) --------
    Bp = _round_up(B, 8)
    if Bp <= 256:
        tb = Bp                                   # single batch tile, no waste
    else:
        tb = 256
        # avoid >25% padded-row waste from the last partial batch tile
        while tb > 8 and (_round_up(Bp, tb) - Bp) * 4 > Bp:
            tb = _round_up(tb // 2, 8)

    w_bytes = Dp * Lp * 2                         # bf16 resident W
    if w_bytes <= _VMEM_BUDGET // 2:
        # VMEM-resident folded W: W is DMA'd once, only x streams.
        tk = Dp
        tl = Lp
        if Bp // tb <= 1 and Lp > 128:
            # small batch: split label axis so the j "parallel" axis has >=2
            # iterations (v7x second TensorCore gets work).
            tl = _largest_divisor_tile(Lp, Lp // 2, 128)
        # shrink tb until W + double-buffered x/out fit the VMEM budget
        while tb > 8 and (w_bytes + 2 * tb * Dp * 2 + 2 * tb * tl * 4) > _VMEM_BUDGET:
            tb = _round_up(tb // 2, 8)
    else:
        # generic tiled fallback for very large D*L (W re-streamed per i)
        tk = _largest_divisor_tile(Dp, 1024, 128)
        tl = _largest_divisor_tile(Lp, 512, 128)

    BpT = _round_up(Bp, tb)

    # bf16 x, zero-padded to lane-dense aligned shape (fuses under jit)
    xp = (jnp.zeros((BpT, Dp), jnp.bfloat16)
              .at[:B, :D].set(x.astype(jnp.bfloat16)))

    grid = (BpT // tb, Lp // tl, Dp // tk)        # reduction (K) axis last

    out = pl.pallas_call(
        rakel_kernel,
        out_shape=jax.ShapeDtypeStruct((BpT, Lp), jnp.float32),
        grid_spec=pltpu.PrefetchScalarGridSpec(
            num_scalar_prefetch=0,
            grid=grid,
            in_specs=[
                pl.BlockSpec((tb, tk), lambda i, j, k: (i, k)),   # x tile
                pl.BlockSpec((tk, tl), lambda i, j, k: (k, j)),   # folded W
            ],
            out_specs=pl.BlockSpec((tb, tl), lambda i, j, k: (i, j)),
        ),
        compiler_params=pltpu.CompilerParams(
            dimension_semantics=("parallel", "parallel", "arbitrary"),
            vmem_limit_bytes=_VMEM_LIMIT),
    )(xp, wp)

    # bias epilogue: fuses with the slice under jit; no bias DMA stream.
    return out[:B, :L] + b_fold


def make_params(dim_in, num_labels, num_ensembles, labelset_size, key):
    """Deterministic synthetic parameters matching RAKEL.__init__ shapes."""
    keys = jax.random.split(key, 2 * (num_ensembles + 1))
    bound = 1.0 / np.sqrt(dim_in)

    # slot 0 = fc_0, slots 1..E = fc_i; weights stored as [D, L] (transposed)
    ws, bs = [], []
    for i in range(num_ensembles + 1):
        w = jax.random.uniform(keys[2 * i], (dim_in, num_labels),
                               minval=-bound, maxval=bound, dtype=jnp.float32)
        b = jax.random.uniform(keys[2 * i + 1], (1, num_labels),
                               minval=-bound, maxval=bound, dtype=jnp.float32)
        ws.append(w)
        bs.append(b)
    w_stack = jnp.stack(ws, axis=0)            # [E+1, D, L]
    b_stack = jnp.stack(bs, axis=0)            # [E+1, 1, L]

    # label sets exactly as in the PyTorch module
    np.random.seed(0)
    label_sets = [np.random.choice(num_labels, labelset_size, replace=False)
                  for _ in range(num_ensembles)]

    masks = np.zeros((num_ensembles + 1, 1, num_labels), dtype=np.float32)
    masks[0, 0, :] = 1.0                        # fc_0 contributes everywhere
    for i, ls in enumerate(label_sets):
        masks[i + 1, 0, ls] = 1.0
    mask_stack = jnp.asarray(masks)             # [E+1, 1, L]

    return w_stack, b_stack, mask_stack, label_sets


def rakel_reference(x, w_stack, b_stack, mask_stack):
    # Unfolded per-ensemble f32 reference (mirrors the PyTorch loop) to verify
    # the algebraic fold + bf16 kernel.
    logits = jnp.einsum("bd,edl->ebl", x, w_stack) + b_stack   # [E+1, B, L]
    return jnp.sum(logits * mask_stack, axis=0)


if __name__ == "__main__":
    B, dim_in, num_labels = 4, 32, 16
    num_ensembles, labelset_size = 10, 8

    key = jax.random.PRNGKey(0)
    k_x, k_p = jax.random.split(key)
    x = jax.random.normal(k_x, (B, dim_in), dtype=jnp.float32)

    w_stack, b_stack, mask_stack, _ = make_params(
        dim_in, num_labels, num_ensembles, labelset_size, k_p)

    # one-time init: fold/pad/cast the weights (hoisted out of the call path)
    wp, b_fold = fold_and_pad_weights(w_stack, b_stack, mask_stack)
    wp, b_fold = jax.block_until_ready((wp, b_fold))

    out = rakel_forward(x, wp, b_fold)
    out = jax.block_until_ready(out)

    ref = rakel_reference(x, w_stack, b_stack, mask_stack)
    # tolerance loosened for bf16 MXU inputs (f32 accumulation)
    np.testing.assert_allclose(np.asarray(out), np.asarray(ref),
                               rtol=5e-2, atol=5e-2)
    print("KERNEL_OK")
</pallas_src>

<mosaic_0001>
module attributes {stable_mosaic.version = 11 : i64} {
  func.func @rakel_kernel(%arg0: i32, %arg1: i32, %arg2: i32, %arg3: memref<8x128xbf16, #tpu.memory_space<vmem>>, %arg4: memref<128x128xbf16, #tpu.memory_space<vmem>>, %arg5: memref<8x128xf32, #tpu.memory_space<vmem>>) attributes {dimension_semantics = [#tpu.dimension_semantics<parallel>, #tpu.dimension_semantics<parallel>, #tpu.dimension_semantics<arbitrary>], iteration_bounds = array<i64: 1, 1, 1>, scalar_prefetch = 0 : i64, scratch_operands = 0 : i64, tpu.core_type = #tpu.core_type<tc>, window_params = [{transform_indices = @transform_0, window_bounds = array<i64: 8, 128>}, {transform_indices = @transform_1, window_bounds = array<i64: 128, 128>}, {transform_indices = @transform_2, window_bounds = array<i64: 8, 128>}]} {
    %c0_i32 = arith.constant 0 : i32
    %0 = arith.cmpi eq, %arg2, %c0_i32 : i32
    %1 = arith.extui %0 : i1 to i32
    %c0_i32_0 = arith.constant 0 : i32
    %2 = arith.cmpi ne, %1, %c0_i32_0 : i32
    scf.if %2 {
      %cst_8 = arith.constant 0.000000e+00 : f32
      %9 = vector.broadcast %cst_8 : f32 to vector<8x128xf32>
      %c0_9 = arith.constant 0 : index
      %c0_10 = arith.constant 0 : index
      %10 = vector.load %arg5[%c0_9, %c0_10] : memref<8x128xf32, #tpu.memory_space<vmem>>, vector<8x128xf32>
      tpu.vector_store %arg5[%c0_9, %c0_10], %9 {strides = array<i32>} : memref<8x128xf32, #tpu.memory_space<vmem>>, vector<8x128xf32>,
    } else {
    }
    %c0 = arith.constant 0 : index
    %c0_1 = arith.constant 0 : index
    %3 = vector.load %arg5[%c0, %c0_1] : memref<8x128xf32, #tpu.memory_space<vmem>>, vector<8x128xf32>
    %c0_2 = arith.constant 0 : index
    %c0_3 = arith.constant 0 : index
    %4 = vector.load %arg3[%c0_2, %c0_3] : memref<8x128xbf16, #tpu.memory_space<vmem>>, vector<8x128xbf16>
    %c0_4 = arith.constant 0 : index
    %c0_5 = arith.constant 0 : index
    %5 = vector.load %arg4[%c0_4, %c0_5] : memref<128x128xbf16, #tpu.memory_space<vmem>>, vector<128x128xbf16>
    %cst = arith.constant dense<0.000000e+00> : vector<8x128xf32>
    %6 = tpu.matmul %4, %5, %cst {dimension_numbers = #tpu.dot_dimension_numbers<[1], [0], [0], [1], [0, 0, 1, 1], [], []>} : vector<8x128xbf16>, vector<128x128xbf16>, vector<8x128xf32> -> vector<8x128xf32>
    %7 = arith.addf %3, %6 : vector<8x128xf32>
    %c0_6 = arith.constant 0 : index
    %c0_7 = arith.constant 0 : index
    %8 = vector.load %arg5[%c0_6, %c0_7] : memref<8x128xf32, #tpu.memory_space<vmem>>, vector<8x128xf32>
    tpu.vector_store %arg5[%c0_6, %c0_7], %7 {strides = array<i32>} : memref<8x128xf32, #tpu.memory_space<vmem>>, vector<8x128xf32>,
    return
  }
  func.func @transform_0(%arg0: i32, %arg1: i32, %arg2: i32) -> (i32, i32) {
    %c0_i32 = arith.constant 0 : i32
    return %arg0, %arg2 : i32, i32
  }
  func.func @transform_1(%arg0: i32, %arg1: i32, %arg2: i32) -> (i32, i32) {
    %c0_i32 = arith.constant 0 : i32
    return %arg2, %arg1 : i32, i32
  }
  func.func @transform_2(%arg0: i32, %arg1: i32, %arg2: i32) -> (i32, i32) {
    %c0_i32 = arith.constant 0 : i32
    return %arg0, %arg1 : i32, i32
  }
}

</mosaic_0001>

<llo_original>
// kernel: rakel_forward.1
$region0: #{rakel_forward.1}
  #allocation0 [shape = 'u32[]', space=smem, size = 0x4, offset = 0x4, fixed_abs, tag = 'smem constant byte address 0x4 - core index']
  #allocation1 [shape = 'u32[144,128]{1,0:T(1,128)}', space=vmem, size = 0x12000, scoped, tag = 'internal scratch']
  %s0 = inlined_call_operand.vmem [shape: bf16[8,128], index: 0, kind: input, shape index: {}]
  %s1 = inlined_call_operand.hbm [shape: bf16[128,128], index: 1, kind: input, shape index: {}]
  %s2 = inlined_call_operand.vmem [shape: f32[8,128], index: 2, kind: output, shape index: {}]
  %s3 = sld [smem:[#allocation0]]
  $region26: #{rakel_forward.1} parent=0
    _
  %s5 = ssub.s32 1, %s3
  %s6 = scalar_select 0, %s5, %s3
  $region1: #{rakel_forward.1} parent=0
    #allocation2 [shape = 'u8[32768]{0}', space=vmem, size = 0x8000, scoped, tag = 'input window, operand 1, single buffered']
    #allocation3 [shape = 's32[1]{0}', space=sflag, size = 0x4, scoped, tag = 'scoped memory for rakel_forward.1']
    %7 = vsyncpa [#allocation3], 0
    // Predicated region
    $region2: #{rakel_forward.1} parent=1 // pred_check
      _
    $region3: #{rakel_forward.1} parent=1 // pred_check_branch
      %9 = sbr.rel (0) target = $region5
    $region4: #{rakel_forward.1} parent=1 // pred_region
      _
    $region5: #{rakel_forward.1} parent=1 // pred_fallthru
      _
    // Predicated region
    $region6: #{rakel_forward.1} parent=1 // pred_check
      _
    $region7: #{rakel_forward.1} parent=1 // pred_check_branch
      %11 = sbr.rel (0) target = $region9
    $region8: #{rakel_forward.1} parent=1 // pred_region
      %s13 = ssub.s32 1024, 1024
      %14 = vsyncadd [#allocation3], %s13
      %s15 = sshll.u32 [#allocation2], 4
      %s16 = int_to_ptr.vmem [resolvable:$true] %s15
      %21 = dma.hbm_to_vmem [thread:$0]  %s1, 1024, %s16, [#allocation3], 64, 64, 4
    $region9: #{rakel_forward.1} parent=1 // pred_fallthru
      _
    // Predicated region
    $region10: #{rakel_forward.1} parent=1 // pred_check
      _
    $region11: #{rakel_forward.1} parent=1 // pred_check_branch
      %23 = sbr.rel (0) target = $region13
    $region12: #{rakel_forward.1} parent=1 // pred_region
      %24 = dma.done [#allocation3], 1024
    $region13: #{rakel_forward.1} parent=1 // pred_fallthru
      _
    %p26 = scmp.eq.s32.totalorder 0, 0
    // Predicated region
    $region14: #{rakel_forward.1} parent=1 // pred_check
      %p27 = pneg %p26
    $region15: #{rakel_forward.1} parent=1 // pred_check_branch
      %29 = sbr.rel (%p27) target = $region17
    $region16: #{rakel_forward.1} parent=1 // pred_region
      %30 = vst [vmem:[%s2] sm:$0xff] 0.0
    $region17: #{rakel_forward.1} parent=1 // pred_fallthru
      _
    %v31 = vld [vmem:[%s2] sm:$0xff]
    %v32 = vld [vmem:[%s0] sm:$0xf]
    %v33 = vld [vmem:[#allocation2] sm:$0xf]
    %v34 = vld [vmem:[#allocation2 + $0x4] sm:$0xf]
    %v35 = vld [vmem:[#allocation2 + $0x8] sm:$0xf]
    %v36 = vld [vmem:[#allocation2 + $0xc] sm:$0xf]
    %v37 = vld [vmem:[#allocation2 + $0x10] sm:$0xf]
    %v38 = vld [vmem:[#allocation2 + $0x14] sm:$0xf]
    %v39 = vld [vmem:[#allocation2 + $0x18] sm:$0xf]
    %v40 = vld [vmem:[#allocation2 + $0x1c] sm:$0xf]
    %v41 = vld [vmem:[#allocation2 + $0x20] sm:$0xf]
    %v42 = vld [vmem:[#allocation2 + $0x24] sm:$0xf]
    %v43 = vld [vmem:[#allocation2 + $0x28] sm:$0xf]
    %v44 = vld [vmem:[#allocation2 + $0x2c] sm:$0xf]
    %v45 = vld [vmem:[#allocation2 + $0x30] sm:$0xf]
    %v46 = vld [vmem:[#allocation2 + $0x34] sm:$0xf]
    %v47 = vld [vmem:[#allocation2 + $0x38] sm:$0xf]
    %v48 = vld [vmem:[#allocation2 + $0x3c] sm:$0xf]
    %v65 = vunpack.c.l.b16 %v33
    %v66 = vunpack.c.l.b16 %v34
    %v67 = vunpack.c.l.b16 %v35
    %v68 = vunpack.c.l.b16 %v36
    %v69 = vunpack.c.l.b16 %v37
    %v70 = vunpack.c.l.b16 %v38
    %v71 = vunpack.c.l.b16 %v39
    %v72 = vunpack.c.l.b16 %v40
    %v73 = vunpack.c.l.b16 %v41
    %v74 = vunpack.c.l.b16 %v42
    %v75 = vunpack.c.l.b16 %v43
    %v76 = vunpack.c.l.b16 %v44
    %v77 = vunpack.c.l.b16 %v45
    %v78 = vunpack.c.l.b16 %v46
    %v79 = vunpack.c.l.b16 %v47
    %v80 = vunpack.c.l.b16 %v48
    %v81 = vpack.c.b16 %v66, %v65
    %v82 = vpack.c.b16 %v68, %v67
    %v83 = vpack.c.b16 %v70, %v69
    %v84 = vpack.c.b16 %v72, %v71
    %v85 = vpack.c.b16 %v74, %v73
    %v86 = vpack.c.b16 %v76, %v75
    %v87 = vpack.c.b16 %v78, %v77
    %v88 = vpack.c.b16 %v80, %v79
    %97 = vmatprep.subr.bf16.mxu0 0
    %98 = vmatpush1.bf16.msra.mxu0 %v81
    %99 = vmatprep.subr.bf16.mxu0 0
    %100 = vmatpush1.bf16.msra.mxu0 %v82
    %101 = vmatprep.subr.bf16.mxu0 0
    %102 = vmatpush1.bf16.msra.mxu0 %v83
    %103 = vmatprep.subr.bf16.mxu0 0
    %104 = vmatpush1.bf16.msra.mxu0 %v84
    %105 = vmatprep.subr.bf16.mxu0 0
    %106 = vmatpush1.bf16.msra.mxu0 %v85
    %107 = vmatprep.subr.bf16.mxu0 0
    %108 = vmatpush1.bf16.msra.mxu0 %v86
    %109 = vmatprep.subr.bf16.mxu0 0
    %110 = vmatpush1.bf16.msra.mxu0 %v87
    %111 = vmatprep.subr.bf16.mxu0 0
    %112 = vmatpush1.bf16.msra.mxu0 %v88
    %113 = vmatprep.subr.bf16.mxu0 0
    %114 = vmatpush1.bf16.msra.mxu0 0
    %115 = vmatprep.subr.bf16.mxu0 0
    %116 = vmatpush1.bf16.msra.mxu0 0
    %117 = vmatprep.subr.bf16.mxu0 0
    %118 = vmatpush1.bf16.msra.mxu0 0
    %119 = vmatprep.subr.bf16.mxu0 0
    %120 = vmatpush1.bf16.msra.mxu0 0
    %121 = vmatprep.subr.bf16.mxu0 0
    %122 = vmatpush1.bf16.msra.mxu0 0
    %123 = vmatprep.subr.bf16.mxu0 0
    %124 = vmatpush1.bf16.msra.mxu0 0
    %125 = vmatprep.subr.bf16.mxu0 0
    %126 = vmatpush1.bf16.msra.mxu0 0
    %127 = vmatprep.subr.bf16.mxu0 0
    %128 = vmatpush1.bf16.msra.mxu0 0
    %129 = vmatprep.mubr.bf16.mxu0 0
    %130 = vmatmul.mubr.bf16.gmra.mrb[0].mxu0 %v32
    %v131 = vpop.f32.mrb[0].mxu0
    %v132 = vadd.f32 0.0, %v131
    %v133 = vpop.f32.mrb[0].mxu0
    %v134 = vpop.f32.mrb[0].mxu0
    %v135 = vpop.f32.mrb[0].mxu0
    %136 = vdwg.mxu0
    %v137 = vadd.f32 %v31, %v132
    %138 = vst [vmem:[%s2] sm:$0xff] %v137
    // Predicated region
    $region18: #{rakel_forward.1} parent=1 // pred_check
      _
    $region19: #{rakel_forward.1} parent=1 // pred_check_branch
      %140 = sbr.rel (0) target = $region21
    $region20: #{rakel_forward.1} parent=1 // pred_region
      _
    $region21: #{rakel_forward.1} parent=1 // pred_fallthru
      _
    // Predicated region
    $region22: #{rakel_forward.1} parent=1 // pred_check
      _
    $region23: #{rakel_forward.1} parent=1 // pred_check_branch
      %142 = sbr.rel (0) target = $region25
    $region24: #{rakel_forward.1} parent=1 // pred_region
      _
    $region25: #{rakel_forward.1} parent=1 // pred_fallthru
      _
    %143 = vsyncpa [#allocation3], 1

</llo_original>
